<compile_context>
chip_gen: v5e
topology: v5e:2x2
jax: 0.10.0
libtpu: 0.0.40
codegen_flags: <defaults>
</compile_context>

<pallas_src>
import math

import jax
import jax.numpy as jnp
from jax import lax
from jax.experimental import pallas as pl
from jax.experimental.pallas import tpu as pltpu  # noqa: F401  (kept for parity / future tiling)

# ---------------- config (small, consistent with the module) ----------------
BATCH = 2
SEQ = 8
HIDDEN = 32
NUM_HEADS = 4
HEAD_DIM = HIDDEN // NUM_HEADS
INTERMEDIATE = 64
LN_EPS = 1e-12
NEG_INF = -1e9  # cross-batch block mask (underflows to exactly 0 after exp)


def _layernorm(x, gamma, beta, eps):
    mean = jnp.mean(x, axis=-1, keepdims=True)
    var = jnp.mean((x - mean) ** 2, axis=-1, keepdims=True)
    return (x - mean) * lax.rsqrt(var + eps) * gamma + beta


def _gelu_exact(x):
    # PyTorch F.gelu default = exact (erf-based) GELU
    return 0.5 * x * (1.0 + lax.erf(x * (1.0 / math.sqrt(2.0))))


def bert_layer_kernel(
    x_ref, mask_ref,
    wqkv_ref, bqkv_ref,
    wd_ref, bd_ref, g1_ref, be1_ref,
    wi_ref, bi_ref, wo_ref, bo_ref, g2_ref, be2_ref,
    out_ref,
):
    x = x_ref[...]            # (B*S, HIDDEN) -- batch folded into sublanes
    mask = mask_ref[...]      # (B*S, B*S) additive mask (attn mask + batch block mask)
    wd = wd_ref[...]          # (HIDDEN, HIDDEN)

    # --- fused QKV projection: one MXU pass for all three projections ---
    qkv = jnp.dot(x, wqkv_ref[...],
                  preferred_element_type=jnp.float32) + bqkv_ref[...]
    q = qkv[:, 0:HIDDEN]
    k = qkv[:, HIDDEN:2 * HIDDEN]
    v = qkv[:, 2 * HIDDEN:3 * HIDDEN]

    scale = 1.0 / math.sqrt(HEAD_DIM)
    # contract last dim of both operands: q @ k^T without materializing a transpose
    dn_qkT = (((1,), (1,)), ((), ()))

    # --- attention: statically unrolled over heads only; both batches share the
    #     score matrix (cross-batch entries masked to -1e9 -> exp underflows to 0).
    #     Head contexts are fused straight into the attention-dense weight slice,
    #     so there is no lane-axis concat anywhere.
    attn_out = None
    for h in range(NUM_HEADS):
        c0, c1 = h * HEAD_DIM, (h + 1) * HEAD_DIM
        qh = q[:, c0:c1]                        # (B*S, D)
        kh = k[:, c0:c1]                        # (B*S, D)
        vh = v[:, c0:c1]                        # (B*S, D)
        s = lax.dot_general(qh, kh, dn_qkT,
                            preferred_element_type=jnp.float32)
        s = s * scale + mask                    # (B*S, B*S)
        # open-coded softmax; denominator reciprocal on the EUP slot
        s_max = jnp.max(s, axis=-1, keepdims=True)
        e = jnp.exp(s - s_max)
        inv_den = pl.reciprocal(jnp.sum(e, axis=-1, keepdims=True), approx=True)
        p = e * inv_den
        ctx_h = jnp.dot(p, vh, preferred_element_type=jnp.float32)      # (B*S, D)
        contrib = jnp.dot(ctx_h, wd[c0:c1, :],                          # (B*S, H)
                          preferred_element_type=jnp.float32)
        attn_out = contrib if attn_out is None else attn_out + contrib
    attn_out = attn_out + bd_ref[...]

    # --- add & norm #1 (attention_dense + residual + layernorm) ---
    h1 = _layernorm(attn_out + x, g1_ref[...], be1_ref[...], LN_EPS)

    # --- feed forward (interm_dense -> gelu) ---
    ff = jnp.dot(h1, wi_ref[...], preferred_element_type=jnp.float32) + bi_ref[...]
    ff = _gelu_exact(ff)                                                 # (B*S, I)

    # --- add & norm #2 (out_dense + residual + layernorm) ---
    out = jnp.dot(ff, wo_ref[...], preferred_element_type=jnp.float32) + bo_ref[...]
    out_ref[...] = _layernorm(out + h1, g2_ref[...], be2_ref[...], LN_EPS)


def bert_layer_pallas(hidden_states, attention_mask, params):
    (wq, bq, wk, bk, wv, bv, wd, bd, g1, be1, wi, bi, wo, bo, g2, be2) = params
    B, S, H = hidden_states.shape
    assert (B, S, H) == (BATCH, SEQ, HIDDEN)

    # Fold batch into the sublane axis.
    x2d = hidden_states.reshape(B * S, H)

    # One-time wrapper-side weight prep: fuse Q/K/V into a single (H, 3H) matmul.
    wqkv = jnp.concatenate([wq, wk, wv], axis=1)      # (H, 3H)
    bqkv = jnp.concatenate([bq, bk, bv], axis=1)      # (1, 3H)

    # Build the combined (B*S, B*S) additive mask:
    #   own-batch key j   -> attention_mask[b, j]
    #   cross-batch entry -> -1e9 (exact zero probability after exp underflow)
    key_mask = attention_mask.reshape(B * S)
    bid = jnp.arange(B * S, dtype=jnp.int32) // S
    same_batch = bid[:, None] == bid[None, :]
    full_mask = jnp.where(same_batch, key_mask[None, :], NEG_INF).astype(jnp.float32)

    # Advisory cost estimate (f32 everywhere).
    BS = B * S
    flops = (
        2 * BS * H * 3 * H                       # fused QKV projection
        + NUM_HEADS * (2 * BS * BS * HEAD_DIM    # scores
                       + 2 * BS * BS * HEAD_DIM  # context
                       + 2 * BS * HEAD_DIM * H)  # fused attention dense
        + 2 * BS * H * INTERMEDIATE              # interm dense
        + 2 * BS * INTERMEDIATE * H              # out dense
    )
    transcendentals = (NUM_HEADS * BS * BS       # exp
                       + BS * INTERMEDIATE       # erf (gelu)
                       + NUM_HEADS * BS          # reciprocal
                       + 2 * BS)                 # rsqrt (2 layernorms)
    weight_elems = (H * 3 * H + 3 * H            # fused qkv
                    + H * H + H                  # attention dense
                    + H * INTERMEDIATE + INTERMEDIATE
                    + INTERMEDIATE * H + H
                    + 4 * H)                     # 2 layernorms
    bytes_accessed = 4 * (2 * BS * H + BS * BS + weight_elems)

    # Single invocation (no grid): every operand is a full-array VMEM block,
    # so weights are loaded exactly once and there is no per-step overhead.
    out2d = pl.pallas_call(
        bert_layer_kernel,
        out_shape=jax.ShapeDtypeStruct((BS, H), jnp.float32),
        cost_estimate=pl.CostEstimate(
            flops=flops,
            transcendentals=transcendentals,
            bytes_accessed=bytes_accessed,
        ),
    )(x2d, full_mask, wqkv, bqkv, wd, bd, g1, be1, wi, bi, wo, bo, g2, be2)

    return out2d.reshape(B, S, H)


# ---------------- pure-JAX reference for verification ----------------
def bert_layer_ref(x, mask, params):
    (wq, bq, wk, bk, wv, bv, wd, bd, g1, be1, wi, bi, wo, bo, g2, be2) = params
    B, S, H = x.shape

    def proj(h, w, b):
        p = jnp.einsum('bsh,hd->bsd', h, w, precision=lax.Precision.HIGHEST) + b
        return p.reshape(B, S, NUM_HEADS, HEAD_DIM).transpose(0, 2, 1, 3)

    q, k, v = proj(x, wq, bq), proj(x, wk, bk), proj(x, wv, bv)
    scores = jnp.einsum('bhqd,bhkd->bhqk', q, k,
                        precision=lax.Precision.HIGHEST) / math.sqrt(HEAD_DIM)
    scores = scores + mask
    probs = jax.nn.softmax(scores, axis=-1)
    ctx = jnp.einsum('bhqk,bhkd->bhqd', probs, v,
                     precision=lax.Precision.HIGHEST)
    ctx = ctx.transpose(0, 2, 1, 3).reshape(B, S, H)

    attn_out = jnp.einsum('bsh,hd->bsd', ctx, wd,
                          precision=lax.Precision.HIGHEST) + bd
    h1 = _layernorm(attn_out + x, g1, be1, LN_EPS)
    ff = _gelu_exact(jnp.einsum('bsh,hi->bsi', h1, wi,
                                precision=lax.Precision.HIGHEST) + bi)
    out = jnp.einsum('bsi,ih->bsh', ff, wo,
                     precision=lax.Precision.HIGHEST) + bo
    return _layernorm(out + h1, g2, be2, LN_EPS)


def init_params(key):
    """Deterministic init; linear weights stored as (in, out), biases as (1, out)."""
    keys = jax.random.split(key, 12)

    def lin(kw, kb, fan_in, fan_out):
        bound = 1.0 / math.sqrt(fan_in)
        w = jax.random.uniform(kw, (fan_in, fan_out), jnp.float32, -bound, bound)
        b = jax.random.uniform(kb, (1, fan_out), jnp.float32, -bound, bound)
        return w, b

    wq, bq = lin(keys[0], keys[1], HIDDEN, HIDDEN)
    wk, bk = lin(keys[2], keys[3], HIDDEN, HIDDEN)
    wv, bv = lin(keys[4], keys[5], HIDDEN, HIDDEN)
    wd, bd = lin(keys[6], keys[7], HIDDEN, HIDDEN)
    wi, bi = lin(keys[8], keys[9], HIDDEN, INTERMEDIATE)
    wo, bo = lin(keys[10], keys[11], INTERMEDIATE, HIDDEN)
    g1 = jnp.ones((1, HIDDEN), jnp.float32)
    be1 = jnp.zeros((1, HIDDEN), jnp.float32)
    g2 = jnp.ones((1, HIDDEN), jnp.float32)
    be2 = jnp.zeros((1, HIDDEN), jnp.float32)
    return (wq, bq, wk, bk, wv, bv, wd, bd, g1, be1, wi, bi, wo, bo, g2, be2)


if __name__ == "__main__":
    key = jax.random.PRNGKey(0)
    k_x, k_m, k_p = jax.random.split(key, 3)

    hidden_states = jax.random.normal(k_x, (BATCH, SEQ, HIDDEN), jnp.float32)
    # additive mask: 0 for visible, -10000 for masked positions
    mask_bits = jax.random.bernoulli(k_m, 0.9, (BATCH, 1, 1, SEQ))
    attention_mask = jnp.where(mask_bits, 0.0, -10000.0).astype(jnp.float32)

    params = init_params(k_p)

    out = bert_layer_pallas(hidden_states, attention_mask, params)
    out = jax.block_until_ready(out)

    ref = bert_layer_ref(hidden_states, attention_mask, params)
    assert out.shape == (BATCH, SEQ, HIDDEN)
    assert jnp.allclose(out, ref, rtol=1e-3, atol=1e-3), (
        float(jnp.max(jnp.abs(out - ref))))

    print("KERNEL_OK")
</pallas_src>

<mosaic_0001>
module attributes {stable_mosaic.version = 11 : i64} {
  func.func @bert_layer_kernel(%arg0: memref<16x32xf32, #tpu.memory_space<vmem>>, %arg1: memref<16x16xf32, #tpu.memory_space<vmem>>, %arg2: memref<32x96xf32, #tpu.memory_space<vmem>>, %arg3: memref<1x96xf32, #tpu.memory_space<vmem>>, %arg4: memref<32x32xf32, #tpu.memory_space<vmem>>, %arg5: memref<1x32xf32, #tpu.memory_space<vmem>>, %arg6: memref<1x32xf32, #tpu.memory_space<vmem>>, %arg7: memref<1x32xf32, #tpu.memory_space<vmem>>, %arg8: memref<32x64xf32, #tpu.memory_space<vmem>>, %arg9: memref<1x64xf32, #tpu.memory_space<vmem>>, %arg10: memref<64x32xf32, #tpu.memory_space<vmem>>, %arg11: memref<1x32xf32, #tpu.memory_space<vmem>>, %arg12: memref<1x32xf32, #tpu.memory_space<vmem>>, %arg13: memref<1x32xf32, #tpu.memory_space<vmem>>, %arg14: memref<16x32xf32, #tpu.memory_space<vmem>>) attributes {dimension_semantics = [], scalar_prefetch = 0 : i64, scratch_operands = 0 : i64, tpu.core_type = #tpu.core_type<tc>} {
    %c0 = arith.constant 0 : index
    %c0_0 = arith.constant 0 : index
    %0 = vector.load %arg0[%c0, %c0_0] : memref<16x32xf32, #tpu.memory_space<vmem>>, vector<16x32xf32>
    %c0_1 = arith.constant 0 : index
    %c0_2 = arith.constant 0 : index
    %1 = vector.load %arg1[%c0_1, %c0_2] : memref<16x16xf32, #tpu.memory_space<vmem>>, vector<16x16xf32>
    %c0_3 = arith.constant 0 : index
    %c0_4 = arith.constant 0 : index
    %2 = vector.load %arg4[%c0_3, %c0_4] : memref<32x32xf32, #tpu.memory_space<vmem>>, vector<32x32xf32>
    %c0_5 = arith.constant 0 : index
    %c0_6 = arith.constant 0 : index
    %3 = vector.load %arg2[%c0_5, %c0_6] : memref<32x96xf32, #tpu.memory_space<vmem>>, vector<32x96xf32>
    %cst = arith.constant dense<0.000000e+00> : vector<16x96xf32>
    %4 = tpu.matmul %0, %3, %cst {dimension_numbers = #tpu.dot_dimension_numbers<[1], [0], [0], [1], [0, 0, 1, 1], [], []>} : vector<16x32xf32>, vector<32x96xf32>, vector<16x96xf32> -> vector<16x96xf32>
    %c0_7 = arith.constant 0 : index
    %c0_8 = arith.constant 0 : index
    %5 = vector.load %arg3[%c0_7, %c0_8] : memref<1x96xf32, #tpu.memory_space<vmem>>, vector<1x96xf32>
    %6 = vector.broadcast %5 : vector<1x96xf32> to vector<16x96xf32>
    %7 = arith.addf %4, %6 : vector<16x96xf32>
    %8 = vector.extract_strided_slice %7 {offsets = [0, 0], sizes = [16, 32], strides = [1, 1]} : vector<16x96xf32> to vector<16x32xf32>
    %9 = vector.extract_strided_slice %7 {offsets = [0, 32], sizes = [16, 32], strides = [1, 1]} : vector<16x96xf32> to vector<16x32xf32>
    %10 = vector.extract_strided_slice %7 {offsets = [0, 64], sizes = [16, 32], strides = [1, 1]} : vector<16x96xf32> to vector<16x32xf32>
    %11 = vector.extract_strided_slice %8 {offsets = [0, 0], sizes = [16, 8], strides = [1, 1]} : vector<16x32xf32> to vector<16x8xf32>
    %12 = vector.extract_strided_slice %9 {offsets = [0, 0], sizes = [16, 8], strides = [1, 1]} : vector<16x32xf32> to vector<16x8xf32>
    %13 = vector.extract_strided_slice %10 {offsets = [0, 0], sizes = [16, 8], strides = [1, 1]} : vector<16x32xf32> to vector<16x8xf32>
    %cst_9 = arith.constant dense<0.000000e+00> : vector<16x16xf32>
    %14 = tpu.matmul %11, %12, %cst_9 {dimension_numbers = #tpu.dot_dimension_numbers<[1], [1], [0], [0], [0, 0, 1, 0], [], []>} : vector<16x8xf32>, vector<16x8xf32>, vector<16x16xf32> -> vector<16x16xf32>
    %cst_10 = arith.constant 0.353553385 : f32
    %15 = vector.broadcast %cst_10 : f32 to vector<16x16xf32>
    %16 = arith.mulf %14, %15 : vector<16x16xf32>
    %17 = arith.addf %16, %1 : vector<16x16xf32>
    %cst_11 = arith.constant dense<0xFF800000> : vector<16xf32>
    %18 = vector.multi_reduction <maximumf>, %17, %cst_11 [1] : vector<16x16xf32> to vector<16xf32>
    %19 = vector.shape_cast %18 : vector<16xf32> to vector<16x1xf32>
    %20 = vector.broadcast %19 : vector<16x1xf32> to vector<16x16xf32>
    %21 = arith.subf %17, %20 : vector<16x16xf32>
    %22 = math.exp %21 : vector<16x16xf32>
    %cst_12 = arith.constant dense<0.000000e+00> : vector<16xf32>
    %23 = vector.multi_reduction <add>, %22, %cst_12 [1] : vector<16x16xf32> to vector<16xf32>
    %24 = vector.shape_cast %23 : vector<16xf32> to vector<16x1xf32>
    %25 = tpu.reciprocal %24 {approx = true} : vector<16x1xf32> -> vector<16x1xf32>
    %26 = vector.broadcast %25 : vector<16x1xf32> to vector<16x16xf32>
    %27 = arith.mulf %22, %26 : vector<16x16xf32>
    %cst_13 = arith.constant dense<0.000000e+00> : vector<16x8xf32>
    %28 = tpu.matmul %27, %13, %cst_13 {dimension_numbers = #tpu.dot_dimension_numbers<[1], [0], [0], [1], [0, 0, 1, 1], [], []>} : vector<16x16xf32>, vector<16x8xf32>, vector<16x8xf32> -> vector<16x8xf32>
    %29 = vector.extract_strided_slice %2 {offsets = [0, 0], sizes = [8, 32], strides = [1, 1]} : vector<32x32xf32> to vector<8x32xf32>
    %cst_14 = arith.constant dense<0.000000e+00> : vector<16x32xf32>
    %30 = tpu.matmul %28, %29, %cst_14 {dimension_numbers = #tpu.dot_dimension_numbers<[1], [0], [0], [1], [0, 0, 1, 1], [], []>} : vector<16x8xf32>, vector<8x32xf32>, vector<16x32xf32> -> vector<16x32xf32>
    %31 = vector.extract_strided_slice %8 {offsets = [0, 8], sizes = [16, 8], strides = [1, 1]} : vector<16x32xf32> to vector<16x8xf32>
    %32 = vector.extract_strided_slice %9 {offsets = [0, 8], sizes = [16, 8], strides = [1, 1]} : vector<16x32xf32> to vector<16x8xf32>
    %33 = vector.extract_strided_slice %10 {offsets = [0, 8], sizes = [16, 8], strides = [1, 1]} : vector<16x32xf32> to vector<16x8xf32>
    %cst_15 = arith.constant dense<0.000000e+00> : vector<16x16xf32>
    %34 = tpu.matmul %31, %32, %cst_15 {dimension_numbers = #tpu.dot_dimension_numbers<[1], [1], [0], [0], [0, 0, 1, 0], [], []>} : vector<16x8xf32>, vector<16x8xf32>, vector<16x16xf32> -> vector<16x16xf32>
    %cst_16 = arith.constant 0.353553385 : f32
    %35 = vector.broadcast %cst_16 : f32 to vector<16x16xf32>
    %36 = arith.mulf %34, %35 : vector<16x16xf32>
    %37 = arith.addf %36, %1 : vector<16x16xf32>
    %cst_17 = arith.constant dense<0xFF800000> : vector<16xf32>
    %38 = vector.multi_reduction <maximumf>, %37, %cst_17 [1] : vector<16x16xf32> to vector<16xf32>
    %39 = vector.shape_cast %38 : vector<16xf32> to vector<16x1xf32>
    %40 = vector.broadcast %39 : vector<16x1xf32> to vector<16x16xf32>
    %41 = arith.subf %37, %40 : vector<16x16xf32>
    %42 = math.exp %41 : vector<16x16xf32>
    %cst_18 = arith.constant dense<0.000000e+00> : vector<16xf32>
    %43 = vector.multi_reduction <add>, %42, %cst_18 [1] : vector<16x16xf32> to vector<16xf32>
    %44 = vector.shape_cast %43 : vector<16xf32> to vector<16x1xf32>
    %45 = tpu.reciprocal %44 {approx = true} : vector<16x1xf32> -> vector<16x1xf32>
    %46 = vector.broadcast %45 : vector<16x1xf32> to vector<16x16xf32>
    %47 = arith.mulf %42, %46 : vector<16x16xf32>
    %cst_19 = arith.constant dense<0.000000e+00> : vector<16x8xf32>
    %48 = tpu.matmul %47, %33, %cst_19 {dimension_numbers = #tpu.dot_dimension_numbers<[1], [0], [0], [1], [0, 0, 1, 1], [], []>} : vector<16x16xf32>, vector<16x8xf32>, vector<16x8xf32> -> vector<16x8xf32>
    %49 = vector.extract_strided_slice %2 {offsets = [8, 0], sizes = [8, 32], strides = [1, 1]} : vector<32x32xf32> to vector<8x32xf32>
    %cst_20 = arith.constant dense<0.000000e+00> : vector<16x32xf32>
    %50 = tpu.matmul %48, %49, %cst_20 {dimension_numbers = #tpu.dot_dimension_numbers<[1], [0], [0], [1], [0, 0, 1, 1], [], []>} : vector<16x8xf32>, vector<8x32xf32>, vector<16x32xf32> -> vector<16x32xf32>
    %51 = arith.addf %30, %50 : vector<16x32xf32>
    %52 = vector.extract_strided_slice %8 {offsets = [0, 16], sizes = [16, 8], strides = [1, 1]} : vector<16x32xf32> to vector<16x8xf32>
    %53 = vector.extract_strided_slice %9 {offsets = [0, 16], sizes = [16, 8], strides = [1, 1]} : vector<16x32xf32> to vector<16x8xf32>
    %54 = vector.extract_strided_slice %10 {offsets = [0, 16], sizes = [16, 8], strides = [1, 1]} : vector<16x32xf32> to vector<16x8xf32>
    %cst_21 = arith.constant dense<0.000000e+00> : vector<16x16xf32>
    %55 = tpu.matmul %52, %53, %cst_21 {dimension_numbers = #tpu.dot_dimension_numbers<[1], [1], [0], [0], [0, 0, 1, 0], [], []>} : vector<16x8xf32>, vector<16x8xf32>, vector<16x16xf32> -> vector<16x16xf32>
    %cst_22 = arith.constant 0.353553385 : f32
    %56 = vector.broadcast %cst_22 : f32 to vector<16x16xf32>
    %57 = arith.mulf %55, %56 : vector<16x16xf32>
    %58 = arith.addf %57, %1 : vector<16x16xf32>
    %cst_23 = arith.constant dense<0xFF800000> : vector<16xf32>
    %59 = vector.multi_reduction <maximumf>, %58, %cst_23 [1] : vector<16x16xf32> to vector<16xf32>
    %60 = vector.shape_cast %59 : vector<16xf32> to vector<16x1xf32>
    %61 = vector.broadcast %60 : vector<16x1xf32> to vector<16x16xf32>
    %62 = arith.subf %58, %61 : vector<16x16xf32>
    %63 = math.exp %62 : vector<16x16xf32>
    %cst_24 = arith.constant dense<0.000000e+00> : vector<16xf32>
    %64 = vector.multi_reduction <add>, %63, %cst_24 [1] : vector<16x16xf32> to vector<16xf32>
    %65 = vector.shape_cast %64 : vector<16xf32> to vector<16x1xf32>
    %66 = tpu.reciprocal %65 {approx = true} : vector<16x1xf32> -> vector<16x1xf32>
    %67 = vector.broadcast %66 : vector<16x1xf32> to vector<16x16xf32>
    %68 = arith.mulf %63, %67 : vector<16x16xf32>
    %cst_25 = arith.constant dense<0.000000e+00> : vector<16x8xf32>
    %69 = tpu.matmul %68, %54, %cst_25 {dimension_numbers = #tpu.dot_dimension_numbers<[1], [0], [0], [1], [0, 0, 1, 1], [], []>} : vector<16x16xf32>, vector<16x8xf32>, vector<16x8xf32> -> vector<16x8xf32>
    %70 = vector.extract_strided_slice %2 {offsets = [16, 0], sizes = [8, 32], strides = [1, 1]} : vector<32x32xf32> to vector<8x32xf32>
    %cst_26 = arith.constant dense<0.000000e+00> : vector<16x32xf32>
    %71 = tpu.matmul %69, %70, %cst_26 {dimension_numbers = #tpu.dot_dimension_numbers<[1], [0], [0], [1], [0, 0, 1, 1], [], []>} : vector<16x8xf32>, vector<8x32xf32>, vector<16x32xf32> -> vector<16x32xf32>
    %72 = arith.addf %51, %71 : vector<16x32xf32>
    %73 = vector.extract_strided_slice %8 {offsets = [0, 24], sizes = [16, 8], strides = [1, 1]} : vector<16x32xf32> to vector<16x8xf32>
    %74 = vector.extract_strided_slice %9 {offsets = [0, 24], sizes = [16, 8], strides = [1, 1]} : vector<16x32xf32> to vector<16x8xf32>
    %75 = vector.extract_strided_slice %10 {offsets = [0, 24], sizes = [16, 8], strides = [1, 1]} : vector<16x32xf32> to vector<16x8xf32>
    %cst_27 = arith.constant dense<0.000000e+00> : vector<16x16xf32>
    %76 = tpu.matmul %73, %74, %cst_27 {dimension_numbers = #tpu.dot_dimension_numbers<[1], [1], [0], [0], [0, 0, 1, 0], [], []>} : vector<16x8xf32>, vector<16x8xf32>, vector<16x16xf32> -> vector<16x16xf32>
    %cst_28 = arith.constant 0.353553385 : f32
    %77 = vector.broadcast %cst_28 : f32 to vector<16x16xf32>
    %78 = arith.mulf %76, %77 : vector<16x16xf32>
    %79 = arith.addf %78, %1 : vector<16x16xf32>
    %cst_29 = arith.constant dense<0xFF800000> : vector<16xf32>
    %80 = vector.multi_reduction <maximumf>, %79, %cst_29 [1] : vector<16x16xf32> to vector<16xf32>
    %81 = vector.shape_cast %80 : vector<16xf32> to vector<16x1xf32>
    %82 = vector.broadcast %81 : vector<16x1xf32> to vector<16x16xf32>
    %83 = arith.subf %79, %82 : vector<16x16xf32>
    %84 = math.exp %83 : vector<16x16xf32>
    %cst_30 = arith.constant dense<0.000000e+00> : vector<16xf32>
    %85 = vector.multi_reduction <add>, %84, %cst_30 [1] : vector<16x16xf32> to vector<16xf32>
    %86 = vector.shape_cast %85 : vector<16xf32> to vector<16x1xf32>
    %87 = tpu.reciprocal %86 {approx = true} : vector<16x1xf32> -> vector<16x1xf32>
    %88 = vector.broadcast %87 : vector<16x1xf32> to vector<16x16xf32>
    %89 = arith.mulf %84, %88 : vector<16x16xf32>
    %cst_31 = arith.constant dense<0.000000e+00> : vector<16x8xf32>
    %90 = tpu.matmul %89, %75, %cst_31 {dimension_numbers = #tpu.dot_dimension_numbers<[1], [0], [0], [1], [0, 0, 1, 1], [], []>} : vector<16x16xf32>, vector<16x8xf32>, vector<16x8xf32> -> vector<16x8xf32>
    %91 = vector.extract_strided_slice %2 {offsets = [24, 0], sizes = [8, 32], strides = [1, 1]} : vector<32x32xf32> to vector<8x32xf32>
    %cst_32 = arith.constant dense<0.000000e+00> : vector<16x32xf32>
    %92 = tpu.matmul %90, %91, %cst_32 {dimension_numbers = #tpu.dot_dimension_numbers<[1], [0], [0], [1], [0, 0, 1, 1], [], []>} : vector<16x8xf32>, vector<8x32xf32>, vector<16x32xf32> -> vector<16x32xf32>
    %93 = arith.addf %72, %92 : vector<16x32xf32>
    %c0_33 = arith.constant 0 : index
    %c0_34 = arith.constant 0 : index
    %94 = vector.load %arg5[%c0_33, %c0_34] : memref<1x32xf32, #tpu.memory_space<vmem>>, vector<1x32xf32>
    %95 = vector.broadcast %94 : vector<1x32xf32> to vector<16x32xf32>
    %96 = arith.addf %93, %95 : vector<16x32xf32>
    %97 = arith.addf %96, %0 : vector<16x32xf32>
    %c0_35 = arith.constant 0 : index
    %c0_36 = arith.constant 0 : index
    %98 = vector.load %arg6[%c0_35, %c0_36] : memref<1x32xf32, #tpu.memory_space<vmem>>, vector<1x32xf32>
    %c0_37 = arith.constant 0 : index
    %c0_38 = arith.constant 0 : index
    %99 = vector.load %arg7[%c0_37, %c0_38] : memref<1x32xf32, #tpu.memory_space<vmem>>, vector<1x32xf32>
    %cst_39 = arith.constant dense<0.000000e+00> : vector<16xf32>
    %100 = vector.multi_reduction <add>, %97, %cst_39 [1] : vector<16x32xf32> to vector<16xf32>
    %101 = vector.shape_cast %100 : vector<16xf32> to vector<16x1xf32>
    %cst_40 = arith.constant 3.200000e+01 : f32
    %102 = vector.broadcast %cst_40 : f32 to vector<16x1xf32>
    %103 = arith.divf %101, %102 : vector<16x1xf32>
    %104 = vector.broadcast %103 : vector<16x1xf32> to vector<16x32xf32>
    %105 = arith.subf %97, %104 : vector<16x32xf32>
    %106 = arith.mulf %105, %105 : vector<16x32xf32>
    %cst_41 = arith.constant dense<0.000000e+00> : vector<16xf32>
    %107 = vector.multi_reduction <add>, %106, %cst_41 [1] : vector<16x32xf32> to vector<16xf32>
    %108 = vector.shape_cast %107 : vector<16xf32> to vector<16x1xf32>
    %cst_42 = arith.constant 3.200000e+01 : f32
    %109 = vector.broadcast %cst_42 : f32 to vector<16x1xf32>
    %110 = arith.divf %108, %109 : vector<16x1xf32>
    %111 = vector.broadcast %103 : vector<16x1xf32> to vector<16x32xf32>
    %112 = arith.subf %97, %111 : vector<16x32xf32>
    %cst_43 = arith.constant 9.99999996E-13 : f32
    %113 = vector.broadcast %cst_43 : f32 to vector<16x1xf32>
    %114 = arith.addf %110, %113 : vector<16x1xf32>
    %115 = math.rsqrt %114 : vector<16x1xf32>
    %116 = vector.broadcast %115 : vector<16x1xf32> to vector<16x32xf32>
    %117 = arith.mulf %112, %116 : vector<16x32xf32>
    %118 = vector.broadcast %98 : vector<1x32xf32> to vector<16x32xf32>
    %119 = arith.mulf %117, %118 : vector<16x32xf32>
    %120 = vector.broadcast %99 : vector<1x32xf32> to vector<16x32xf32>
    %121 = arith.addf %119, %120 : vector<16x32xf32>
    %c0_44 = arith.constant 0 : index
    %c0_45 = arith.constant 0 : index
    %122 = vector.load %arg8[%c0_44, %c0_45] : memref<32x64xf32, #tpu.memory_space<vmem>>, vector<32x64xf32>
    %cst_46 = arith.constant dense<0.000000e+00> : vector<16x64xf32>
    %123 = tpu.matmul %121, %122, %cst_46 {dimension_numbers = #tpu.dot_dimension_numbers<[1], [0], [0], [1], [0, 0, 1, 1], [], []>} : vector<16x32xf32>, vector<32x64xf32>, vector<16x64xf32> -> vector<16x64xf32>
    %c0_47 = arith.constant 0 : index
    %c0_48 = arith.constant 0 : index
    %124 = vector.load %arg9[%c0_47, %c0_48] : memref<1x64xf32, #tpu.memory_space<vmem>>, vector<1x64xf32>
    %125 = vector.broadcast %124 : vector<1x64xf32> to vector<16x64xf32>
    %126 = arith.addf %123, %125 : vector<16x64xf32>
    %cst_49 = arith.constant 5.000000e-01 : f32
    %127 = vector.broadcast %cst_49 : f32 to vector<16x64xf32>
    %128 = arith.mulf %127, %126 : vector<16x64xf32>
    %cst_50 = arith.constant 0.707106769 : f32
    %129 = vector.broadcast %cst_50 : f32 to vector<16x64xf32>
    %130 = arith.mulf %126, %129 : vector<16x64xf32>
    %131 = math.erf %130 : vector<16x64xf32>
    %cst_51 = arith.constant 1.000000e+00 : f32
    %132 = vector.broadcast %cst_51 : f32 to vector<16x64xf32>
    %133 = arith.addf %132, %131 : vector<16x64xf32>
    %134 = arith.mulf %128, %133 : vector<16x64xf32>
    %c0_52 = arith.constant 0 : index
    %c0_53 = arith.constant 0 : index
    %135 = vector.load %arg10[%c0_52, %c0_53] : memref<64x32xf32, #tpu.memory_space<vmem>>, vector<64x32xf32>
    %cst_54 = arith.constant dense<0.000000e+00> : vector<16x32xf32>
    %136 = tpu.matmul %134, %135, %cst_54 {dimension_numbers = #tpu.dot_dimension_numbers<[1], [0], [0], [1], [0, 0, 1, 1], [], []>} : vector<16x64xf32>, vector<64x32xf32>, vector<16x32xf32> -> vector<16x32xf32>
    %c0_55 = arith.constant 0 : index
    %c0_56 = arith.constant 0 : index
    %137 = vector.load %arg11[%c0_55, %c0_56] : memref<1x32xf32, #tpu.memory_space<vmem>>, vector<1x32xf32>
    %138 = vector.broadcast %137 : vector<1x32xf32> to vector<16x32xf32>
    %139 = arith.addf %136, %138 : vector<16x32xf32>
    %140 = arith.addf %139, %121 : vector<16x32xf32>
    %c0_57 = arith.constant 0 : index
    %c0_58 = arith.constant 0 : index
    %141 = vector.load %arg12[%c0_57, %c0_58] : memref<1x32xf32, #tpu.memory_space<vmem>>, vector<1x32xf32>
    %c0_59 = arith.constant 0 : index
    %c0_60 = arith.constant 0 : index
    %142 = vector.load %arg13[%c0_59, %c0_60] : memref<1x32xf32, #tpu.memory_space<vmem>>, vector<1x32xf32>
    %cst_61 = arith.constant dense<0.000000e+00> : vector<16xf32>
    %143 = vector.multi_reduction <add>, %140, %cst_61 [1] : vector<16x32xf32> to vector<16xf32>
    %144 = vector.shape_cast %143 : vector<16xf32> to vector<16x1xf32>
    %cst_62 = arith.constant 3.200000e+01 : f32
    %145 = vector.broadcast %cst_62 : f32 to vector<16x1xf32>
    %146 = arith.divf %144, %145 : vector<16x1xf32>
    %147 = vector.broadcast %146 : vector<16x1xf32> to vector<16x32xf32>
    %148 = arith.subf %140, %147 : vector<16x32xf32>
    %149 = arith.mulf %148, %148 : vector<16x32xf32>
    %cst_63 = arith.constant dense<0.000000e+00> : vector<16xf32>
    %150 = vector.multi_reduction <add>, %149, %cst_63 [1] : vector<16x32xf32> to vector<16xf32>
    %151 = vector.shape_cast %150 : vector<16xf32> to vector<16x1xf32>
    %cst_64 = arith.constant 3.200000e+01 : f32
    %152 = vector.broadcast %cst_64 : f32 to vector<16x1xf32>
    %153 = arith.divf %151, %152 : vector<16x1xf32>
    %154 = vector.broadcast %146 : vector<16x1xf32> to vector<16x32xf32>
    %155 = arith.subf %140, %154 : vector<16x32xf32>
    %cst_65 = arith.constant 9.99999996E-13 : f32
    %156 = vector.broadcast %cst_65 : f32 to vector<16x1xf32>
    %157 = arith.addf %153, %156 : vector<16x1xf32>
    %158 = math.rsqrt %157 : vector<16x1xf32>
    %159 = vector.broadcast %158 : vector<16x1xf32> to vector<16x32xf32>
    %160 = arith.mulf %155, %159 : vector<16x32xf32>
    %161 = vector.broadcast %141 : vector<1x32xf32> to vector<16x32xf32>
    %162 = arith.mulf %160, %161 : vector<16x32xf32>
    %163 = vector.broadcast %142 : vector<1x32xf32> to vector<16x32xf32>
    %164 = arith.addf %162, %163 : vector<16x32xf32>
    %c0_66 = arith.constant 0 : index
    %c0_67 = arith.constant 0 : index
    %165 = vector.load %arg14[%c0_66, %c0_67] : memref<16x32xf32, #tpu.memory_space<vmem>>, vector<16x32xf32>
    tpu.vector_store %arg14[%c0_66, %c0_67], %164 {strides = array<i32>} : memref<16x32xf32, #tpu.memory_space<vmem>>, vector<16x32xf32>,
    return
  }
}

</mosaic_0001>

<llo_original>
// kernel: tpu_custom_call.1
$region0: #{tpu_custom_call.1}
  #allocation0 [shape = 'u32[]', space=smem, size = 0x4, offset = 0x4, fixed_abs, tag = 'smem constant byte address 0x4 - core index']
  #allocation1 [shape = 'u32[72,128]{1,0:T(1,128)}', space=vmem, size = 0x9000, scoped, tag = 'internal scratch']
  %s0 = inlined_call_operand.hbm [shape: f32[16,32], index: 0, kind: input, shape index: {}]
  %s1 = inlined_call_operand.hbm [shape: f32[16,16], index: 1, kind: input, shape index: {}]
  %s2 = inlined_call_operand.vmem [shape: f32[32,96], index: 2, kind: input, shape index: {}]
  %s3 = inlined_call_operand.vmem [shape: f32[1,96], index: 3, kind: input, shape index: {}]
  %s4 = inlined_call_operand.vmem [shape: f32[32,32], index: 4, kind: input, shape index: {}]
  %s5 = inlined_call_operand.vmem [shape: f32[1,32], index: 5, kind: input, shape index: {}]
  %s6 = inlined_call_operand.vmem [shape: f32[1,32], index: 6, kind: input, shape index: {}]
  %s7 = inlined_call_operand.vmem [shape: f32[1,32], index: 7, kind: input, shape index: {}]
  %s8 = inlined_call_operand.vmem [shape: f32[32,64], index: 8, kind: input, shape index: {}]
  %s9 = inlined_call_operand.vmem [shape: f32[1,64], index: 9, kind: input, shape index: {}]
  %s10 = inlined_call_operand.vmem [shape: f32[64,32], index: 10, kind: input, shape index: {}]
  %s11 = inlined_call_operand.vmem [shape: f32[1,32], index: 11, kind: input, shape index: {}]
  %s12 = inlined_call_operand.vmem [shape: f32[1,32], index: 12, kind: input, shape index: {}]
  %s13 = inlined_call_operand.vmem [shape: f32[1,32], index: 13, kind: input, shape index: {}]
  %s14 = inlined_call_operand.hbm [shape: f32[16,32], index: 14, kind: output, shape index: {}]
  %s15 = sld [smem:[#allocation0]]
  $region74: #{tpu_custom_call.1} parent=0
    _
  %s17 = ssub.s32 1, %s15
  %s18 = scalar_select 0, %s17, %s15
  $region1: #{tpu_custom_call.1} parent=0
    #allocation2 [shape = 'u8[8192]{0}', space=vmem, size = 0x2000, scoped, tag = 'input window, operand 0, single buffered']
    #allocation3 [shape = 's32[1]{0}', space=sflag, size = 0x4, scoped, tag = 'scoped memory for tpu_custom_call.1']
    #allocation4 [shape = 's32[1]{0}', space=sflag, size = 0x4, scoped, tag = 'scoped memory for tpu_custom_call.1']
    #allocation5 [shape = 'u8[8192]{0}', space=vmem, size = 0x2000, scoped, tag = 'input window, operand 1, single buffered']
    #allocation6 [shape = 's32[1]{0}', space=sflag, size = 0x4, scoped, tag = 'scoped memory for tpu_custom_call.1']
    #allocation7 [shape = 'u8[8192]{0}', space=vmem, size = 0x2000, scoped, tag = 'output window, operand 0, single buffered']
    %19 = vsyncpa [#allocation3], 0
    %20 = vsyncpa [#allocation6], 0
    %21 = vsyncpa [#allocation4], 0
    // Predicated region
    $region2: #{tpu_custom_call.1} parent=1 // pred_check
      _
    $region3: #{tpu_custom_call.1} parent=1 // pred_check_branch
      %23 = sbr.rel (0) target = $region5
    $region4: #{tpu_custom_call.1} parent=1 // pred_region
      %25 = vsyncadd [#allocation3], 0
      %s26 = sshll.u32 %s0, 4
      %s27 = int_to_ptr.hbm [resolvable:$true] %s26
      %s28 = sshll.u32 [#allocation2], 4
      %s29 = int_to_ptr.vmem [resolvable:$true] %s28
      %34 = dma.hbm_to_vmem [thread:$0]  %s27, 256, %s29, [#allocation3], 128, 128, 8
    $region5: #{tpu_custom_call.1} parent=1 // pred_fallthru
      _
    // Predicated region
    $region6: #{tpu_custom_call.1} parent=1 // pred_check
      _
    $region7: #{tpu_custom_call.1} parent=1 // pred_check_branch
      %36 = sbr.rel (0) target = $region9
    $region8: #{tpu_custom_call.1} parent=1 // pred_region
      %38 = vsyncadd [#allocation6], 0
      %s39 = sshll.u32 %s1, 4
      %s40 = int_to_ptr.hbm [resolvable:$true] %s39
      %s41 = sshll.u32 [#allocation5], 4
      %s42 = int_to_ptr.vmem [resolvable:$true] %s41
      %47 = dma.hbm_to_vmem [thread:$0]  %s40, 256, %s42, [#allocation6], 128, 128, 8
    $region9: #{tpu_custom_call.1} parent=1 // pred_fallthru
      _
    // Predicated region
    $region10: #{tpu_custom_call.1} parent=1 // pred_check
      _
    $region11: #{tpu_custom_call.1} parent=1 // pred_check_branch
      %49 = sbr.rel (0) target = $region13
    $region12: #{tpu_custom_call.1} parent=1 // pred_region
      _
    $region13: #{tpu_custom_call.1} parent=1 // pred_fallthru
      _
    // Predicated region
    $region14: #{tpu_custom_call.1} parent=1 // pred_check
      _
    $region15: #{tpu_custom_call.1} parent=1 // pred_check_branch
      %51 = sbr.rel (0) target = $region17
    $region16: #{tpu_custom_call.1} parent=1 // pred_region
      _
    $region17: #{tpu_custom_call.1} parent=1 // pred_fallthru
      _
    // Predicated region
    $region18: #{tpu_custom_call.1} parent=1 // pred_check
      _
    $region19: #{tpu_custom_call.1} parent=1 // pred_check_branch
      %53 = sbr.rel (0) target = $region21
    $region20: #{tpu_custom_call.1} parent=1 // pred_region
      _
    $region21: #{tpu_custom_call.1} parent=1 // pred_fallthru
      _
    // Predicated region
    $region22: #{tpu_custom_call.1} parent=1 // pred_check
      _
    $region23: #{tpu_custom_call.1} parent=1 // pred_check_branch
      %55 = sbr.rel (0) target = $region25
    $region24: #{tpu_custom_call.1} parent=1 // pred_region
      _
    $region25: #{tpu_custom_call.1} parent=1 // pred_fallthru
      _
    // Predicated region
    $region26: #{tpu_custom_call.1} parent=1 // pred_check
      _
    $region27: #{tpu_custom_call.1} parent=1 // pred_check_branch
      %57 = sbr.rel (0) target = $region29
    $region28: #{tpu_custom_call.1} parent=1 // pred_region
      _
    $region29: #{tpu_custom_call.1} parent=1 // pred_fallthru
      _
    // Predicated region
    $region30: #{tpu_custom_call.1} parent=1 // pred_check
      _
    $region31: #{tpu_custom_call.1} parent=1 // pred_check_branch
      %59 = sbr.rel (0) target = $region33
    $region32: #{tpu_custom_call.1} parent=1 // pred_region
      _
    $region33: #{tpu_custom_call.1} parent=1 // pred_fallthru
      _
    // Predicated region
    $region34: #{tpu_custom_call.1} parent=1 // pred_check
      _
    $region35: #{tpu_custom_call.1} parent=1 // pred_check_branch
      %61 = sbr.rel (0) target = $region37
    $region36: #{tpu_custom_call.1} parent=1 // pred_region
      _
    $region37: #{tpu_custom_call.1} parent=1 // pred_fallthru
      _
    // Predicated region
    $region38: #{tpu_custom_call.1} parent=1 // pred_check
      _
    $region39: #{tpu_custom_call.1} parent=1 // pred_check_branch
      %63 = sbr.rel (0) target = $region41
    $region40: #{tpu_custom_call.1} parent=1 // pred_region
      _
    $region41: #{tpu_custom_call.1} parent=1 // pred_fallthru
      _
    // Predicated region
    $region42: #{tpu_custom_call.1} parent=1 // pred_check
      _
    $region43: #{tpu_custom_call.1} parent=1 // pred_check_branch
      %65 = sbr.rel (0) target = $region45
    $region44: #{tpu_custom_call.1} parent=1 // pred_region
      _
    $region45: #{tpu_custom_call.1} parent=1 // pred_fallthru
      _
    // Predicated region
    $region46: #{tpu_custom_call.1} parent=1 // pred_check
      _
    $region47: #{tpu_custom_call.1} parent=1 // pred_check_branch
      %67 = sbr.rel (0) target = $region49
    $region48: #{tpu_custom_call.1} parent=1 // pred_region
      _
    $region49: #{tpu_custom_call.1} parent=1 // pred_fallthru
      _
    // Predicated region
    $region50: #{tpu_custom_call.1} parent=1 // pred_check
      _
    $region51: #{tpu_custom_call.1} parent=1 // pred_check_branch
      %69 = sbr.rel (0) target = $region53
    $region52: #{tpu_custom_call.1} parent=1 // pred_region
      _
    $region53: #{tpu_custom_call.1} parent=1 // pred_fallthru
      _
    // Predicated region
    $region54: #{tpu_custom_call.1} parent=1 // pred_check
      _
    $region55: #{tpu_custom_call.1} parent=1 // pred_check_branch
      %71 = sbr.rel (0) target = $region57
    $region56: #{tpu_custom_call.1} parent=1 // pred_region
      _
    $region57: #{tpu_custom_call.1} parent=1 // pred_fallthru
      _
    // Predicated region
    $region58: #{tpu_custom_call.1} parent=1 // pred_check
      _
    $region59: #{tpu_custom_call.1} parent=1 // pred_check_branch
      %73 = sbr.rel (0) target = $region61
    $region60: #{tpu_custom_call.1} parent=1 // pred_region
      %75 = dma.done [#allocation3], 256
    $region61: #{tpu_custom_call.1} parent=1 // pred_fallthru
      _
    // Predicated region
    $region62: #{tpu_custom_call.1} parent=1 // pred_check
      _
    $region63: #{tpu_custom_call.1} parent=1 // pred_check_branch
      %77 = sbr.rel (0) target = $region65
    $region64: #{tpu_custom_call.1} parent=1 // pred_region
      %79 = dma.done [#allocation6], 256
    $region65: #{tpu_custom_call.1} parent=1 // pred_fallthru
      _
    %v80 = vld [vmem:[#allocation2] sm:$0xff]
    %v81 = vld [vmem:[#allocation2 + $0x8] sm:$0xff]
    %v82 = vld [vmem:[#allocation5] sm:$0xff]
    %v83 = vld [vmem:[#allocation5 + $0x8] sm:$0xff]
    %v84 = vld [vmem:[%s4] sm:$0xff]
    %v85 = vld [vmem:[%s4 + $0x8] sm:$0xff]
    %v86 = vld [vmem:[%s4 + $0x10] sm:$0xff]
    %v87 = vld [vmem:[%s4 + $0x18] sm:$0xff]
    %v88 = vld [vmem:[%s2] sm:$0xff]
    %v89 = vld [vmem:[%s2 + $0x8] sm:$0xff]
    %v90 = vld [vmem:[%s2 + $0x10] sm:$0xff]
    %v91 = vld [vmem:[%s2 + $0x18] sm:$0xff]
    %v92 = vld [vmem:[%s3] sm:$0x1]
    %v94 = vperm.slane %v92, 0
    %vm96 = vcmask 261120
    %v98 = vsel %vm96, %v80, 0
    %v101 = vsel %vm96, %v81, 0
    %103 = vmatpush.msra.mxu0 0.0
    %104 = vmatpush.msra.mxu0 0.0
    %105 = vmatpush.msra.mxu0 0.0
    %106 = vmatpush.msra.mxu0 0.0
    %107 = vmatpush.msra.mxu0 0.0
    %108 = vmatpush.msra.mxu0 0.0
    %109 = vmatpush.msra.mxu0 0.0
    %110 = vmatpush.msra.mxu0 0.0
    %111 = vmatpush.msra.mxu0 0.0
    %112 = vmatpush.msra.mxu0 0.0
    %113 = vmatpush.msra.mxu0 0.0
    %114 = vmatpush.msra.mxu0 0.0
    %115 = vmatpush.msra.mxu0 %v91
    %116 = vmatpush.msra.mxu0 %v90
    %117 = vmatpush.msra.mxu0 %v89
    %118 = vmatpush.msra.mxu0 %v88
    %119 = vmatmul.f32.gmra.mxu0 %v98
    %v120 = vpop.f32.mrf.mxu0
    %v121 = vadd.f32 %v94, %v120
    %122 = vmatmul.f32.gmra.mxu0 %v101
    %v123 = vpop.f32.mrf.mxu0
    %v124 = vadd.f32 %v94, %v123
    %125 = vdwg.mxu0
    %128 = vrot.lane.b32.xlu0 %v121, 96
    %v129 = vpop.permute.xlu0 %128
    %130 = vrot.lane.b32.xlu0 %v124, 96
    %v131 = vpop.permute.xlu0 %130
    %vm132 = vcmask 64512
    %v133 = vsel %vm132, %v121, 0
    %v135 = vsel %vm132, %v124, 0
    %v137 = vsel %vm132, %v129, 0
    %v139 = vsel %vm132, %v131, 0
    %141 = vmatpush.xpose.msra.mxu0 0.0
    %142 = vmatpush.xpose.msra.mxu0 0.0
    %143 = vmatpush.xpose.msra.mxu0 0.0
    %144 = vmatpush.xpose.msra.mxu0 0.0
    %145 = vmatpush.xpose.msra.mxu0 0.0
    %146 = vmatpush.xpose.msra.mxu0 0.0
    %147 = vmatpush.xpose.msra.mxu0 0.0
    %148 = vmatpush.xpose.msra.mxu0 0.0
    %149 = vmatpush.xpose.msra.mxu0 0.0
    %150 = vmatpush.xpose.msra.mxu0 0.0
    %151 = vmatpush.xpose.msra.mxu0 0.0
    %152 = vmatpush.xpose.msra.mxu0 0.0
    %153 = vmatpush.xpose.msra.mxu0 0.0
    %154 = vmatpush.xpose.msra.mxu0 0.0
    %155 = vmatpush.xpose.msra.mxu0 %v139
    %156 = vmatpush.xpose.msra.mxu0 %v137
    %157 = vmatmul.f32.gmra.mxu0 %v133
    %v158 = vpop.f32.mrf.mxu0
    %v159 = vadd.f32 0.0, %v158
    %160 = vmatmul.f32.gmra.mxu0 %v135
    %v161 = vpop.f32.mrf.mxu0
    %v162 = vadd.f32 0.0, %v161
    %163 = vdwg.mxu0
    %v164 = vmul.f32 %v159, 0.35355338
    %v165 = vmul.f32 %v162, 0.35355338
    %v166 = vadd.f32 %v164, %v82
    %v167 = vadd.f32 %v165, %v83
    %vm168 = vcmask 130048
    %v169 = vsel %vm168, %v166, -inf
    %170 = vmax.xlane.f32.xlu0 %v169
    %v171 = vpop.xlane.xlu0 %170
    %v172 = vsel %vm168, %v167, -inf
    %173 = vmax.xlane.f32.xlu0 %v172
    %v174 = vpop.xlane.xlu0 %173
    %v175 = vsub.f32 %v166, %v171
    %v176 = vsub.f32 %v167, %v174
    %v177 = vmul.f32 %v175, 1.442695
    %v178 = vpow.pop %v177
    %v179 = vmul.f32 %v176, 1.442695
    %v180 = vpow.pop %v179
    %v181 = vsel %vm168, %v178, 0.0
    %182 = vadd.xlane.f32.xlu0 %v181
    %v183 = vpop.xlane.xlu0 %182
    %v184 = vsel %vm168, %v180, 0.0
    %185 = vadd.xlane.f32.xlu0 %v184
    %v186 = vpop.xlane.xlu0 %185
    %v187 = vrcp.pop %v183
    %v188 = vrcp.pop %v186
    %v189 = vmul.f32 %v178, %v187
    %v190 = vmul.f32 %v180, %v188
    %191 = vrot.lane.b32.xlu0 %v121, 64
    %v192 = vpop.permute.xlu0 %191
    %193 = vrot.lane.b32.xlu0 %v124, 64
    %v194 = vpop.permute.xlu0 %193
    %v198 = vsel %vm168, %v189, 0
    %v201 = vsel %vm168, %v190, 0
    %203 = vmatpush.msra.mxu0 0.0
    %204 = vmatpush.msra.mxu0 0.0
    %205 = vmatpush.msra.mxu0 0.0
    %206 = vmatpush.msra.mxu0 0.0
    %207 = vmatpush.msra.mxu0 0.0
    %208 = vmatpush.msra.mxu0 0.0
    %209 = vmatpush.msra.mxu0 0.0
    %210 = vmatpush.msra.mxu0 0.0
    %211 = vmatpush.msra.mxu0 0.0
    %212 = vmatpush.msra.mxu0 0.0
    %213 = vmatpush.msra.mxu0 0.0
    %214 = vmatpush.msra.mxu0 0.0
    %215 = vmatpush.msra.mxu0 0.0
    %216 = vmatpush.msra.mxu0 0.0
    %217 = vmatpush.msra.mxu0 %v194
    %218 = vmatpush.msra.mxu0 %v192
    %219 = vmatmul.f32.gmra.mxu0 %v198
    %v220 = vpop.f32.mrf.mxu0
    %v221 = vadd.f32 0.0, %v220
    %222 = vmatmul.f32.gmra.mxu0 %v201
    %v223 = vpop.f32.mrf.mxu0
    %v224 = vadd.f32 0.0, %v223
    %225 = vdwg.mxu0
    %226 = vrot.lane.b32.xlu0 %v121, 120
    %v227 = vpop.permute.xlu0 %226
    %228 = vrot.lane.b32.xlu0 %v124, 120
    %v229 = vpop.permute.xlu0 %228
    %230 = vrot.lane.b32.xlu0 %v121, 88
    %v231 = vpop.permute.xlu0 %230
    %232 = vrot.lane.b32.xlu0 %v124, 88
    %v233 = vpop.permute.xlu0 %232
    %v234 = vsel %vm132, %v227, 0
    %v236 = vsel %vm132, %v229, 0
    %v238 = vsel %vm132, %v231, 0
    %v240 = vsel %vm132, %v233, 0
    %242 = vmatpush.xpose.msra.mxu0 0.0
    %243 = vmatpush.xpose.msra.mxu0 0.0
    %244 = vmatpush.xpose.msra.mxu0 0.0
    %245 = vmatpush.xpose.msra.mxu0 0.0
    %246 = vmatpush.xpose.msra.mxu0 0.0
    %247 = vmatpush.xpose.msra.mxu0 0.0
    %248 = vmatpush.xpose.msra.mxu0 0.0
    %249 = vmatpush.xpose.msra.mxu0 0.0
    %250 = vmatpush.xpose.msra.mxu0 0.0
    %251 = vmatpush.xpose.msra.mxu0 0.0
    %252 = vmatpush.xpose.msra.mxu0 0.0
    %253 = vmatpush.xpose.msra.mxu0 0.0
    %254 = vmatpush.xpose.msra.mxu0 0.0
    %255 = vmatpush.xpose.msra.mxu0 0.0
    %256 = vmatpush.xpose.msra.mxu0 %v240
    %257 = vmatpush.xpose.msra.mxu0 %v238
    %258 = vmatmul.f32.gmra.mxu0 %v234
    %v259 = vpop.f32.mrf.mxu0
    %v260 = vadd.f32 0.0, %v259
    %261 = vmatmul.f32.gmra.mxu0 %v236
    %v262 = vpop.f32.mrf.mxu0
    %v263 = vadd.f32 0.0, %v262
    %264 = vdwg.mxu0
    %v265 = vmul.f32 %v260, 0.35355338
    %v266 = vmul.f32 %v263, 0.35355338
    %v267 = vadd.f32 %v265, %v82
    %v268 = vadd.f32 %v266, %v83
    %v269 = vsel %vm168, %v267, -inf
    %270 = vmax.xlane.f32.xlu0 %v269
    %v271 = vpop.xlane.xlu0 %270
    %v272 = vsel %vm168, %v268, -inf
    %273 = vmax.xlane.f32.xlu0 %v272
    %v274 = vpop.xlane.xlu0 %273
    %v275 = vsub.f32 %v267, %v271
    %v276 = vsub.f32 %v268, %v274
    %v277 = vmul.f32 %v275, 1.442695
    %v278 = vpow.pop %v277
    %v279 = vmul.f32 %v276, 1.442695
    %v280 = vpow.pop %v279
    %v281 = vsel %vm168, %v278, 0.0
    %282 = vadd.xlane.f32.xlu0 %v281
    %v283 = vpop.xlane.xlu0 %282
    %v284 = vsel %vm168, %v280, 0.0
    %285 = vadd.xlane.f32.xlu0 %v284
    %v286 = vpop.xlane.xlu0 %285
    %v287 = vrcp.pop %v283
    %v288 = vrcp.pop %v286
    %v289 = vmul.f32 %v278, %v287
    %v290 = vmul.f32 %v280, %v288
    %291 = vrot.lane.b32.xlu0 %v121, 56
    %v292 = vpop.permute.xlu0 %291
    %293 = vrot.lane.b32.xlu0 %v124, 56
    %v294 = vpop.permute.xlu0 %293
    %v298 = vsel %vm168, %v289, 0
    %v301 = vsel %vm168, %v290, 0
    %303 = vmatpush.msra.mxu0 0.0
    %304 = vmatpush.msra.mxu0 0.0
    %305 = vmatpush.msra.mxu0 0.0
    %306 = vmatpush.msra.mxu0 0.0
    %307 = vmatpush.msra.mxu0 0.0
    %308 = vmatpush.msra.mxu0 0.0
    %309 = vmatpush.msra.mxu0 0.0
    %310 = vmatpush.msra.mxu0 0.0
    %311 = vmatpush.msra.mxu0 0.0
    %312 = vmatpush.msra.mxu0 0.0
    %313 = vmatpush.msra.mxu0 0.0
    %314 = vmatpush.msra.mxu0 0.0
    %315 = vmatpush.msra.mxu0 0.0
    %316 = vmatpush.msra.mxu0 0.0
    %317 = vmatpush.msra.mxu0 %v294
    %318 = vmatpush.msra.mxu0 %v292
    %319 = vmatmul.f32.gmra.mxu0 %v298
    %v320 = vpop.f32.mrf.mxu0
    %v321 = vadd.f32 0.0, %v320
    %322 = vmatmul.f32.gmra.mxu0 %v301
    %v323 = vpop.f32.mrf.mxu0
    %v324 = vadd.f32 0.0, %v323
    %325 = vdwg.mxu0
    %v327 = vsel %vm132, %v321, 0
    %v330 = vsel %vm132, %v324, 0
    %332 = vmatpush.msra.mxu0 0.0
    %333 = vmatpush.msra.mxu0 0.0
    %334 = vmatpush.msra.mxu0 0.0
    %335 = vmatpush.msra.mxu0 0.0
    %336 = vmatpush.msra.mxu0 0.0
    %337 = vmatpush.msra.mxu0 0.0
    %338 = vmatpush.msra.mxu0 0.0
    %339 = vmatpush.msra.mxu0 0.0
    %340 = vmatpush.msra.mxu0 0.0
    %341 = vmatpush.msra.mxu0 0.0
    %342 = vmatpush.msra.mxu0 0.0
    %343 = vmatpush.msra.mxu0 0.0
    %344 = vmatpush.msra.mxu0 0.0
    %345 = vmatpush.msra.mxu0 0.0
    %346 = vmatpush.msra.mxu0 0.0
    %347 = vmatpush.msra.mxu0 %v85
    %348 = vmatmul.f32.gmra.mxu0 %v327
    %v349 = vpop.f32.mrf.mxu0
    %v350 = vadd.f32 0.0, %v349
    %351 = vmatmul.f32.gmra.mxu0 %v330
    %v352 = vpop.f32.mrf.mxu0
    %v353 = vadd.f32 0.0, %v352
    %354 = vdwg.mxu0
    %v356 = vsel %vm132, %v221, 0
    %v359 = vsel %vm132, %v224, 0
    %361 = vmatpush.msra.mxu0 0.0
    %362 = vmatpush.msra.mxu0 0.0
    %363 = vmatpush.msra.mxu0 0.0
    %364 = vmatpush.msra.mxu0 0.0
    %365 = vmatpush.msra.mxu0 0.0
    %366 = vmatpush.msra.mxu0 0.0
    %367 = vmatpush.msra.mxu0 0.0
    %368 = vmatpush.msra.mxu0 0.0
    %369 = vmatpush.msra.mxu0 0.0
    %370 = vmatpush.msra.mxu0 0.0
    %371 = vmatpush.msra.mxu0 0.0
    %372 = vmatpush.msra.mxu0 0.0
    %373 = vmatpush.msra.mxu0 0.0
    %374 = vmatpush.msra.mxu0 0.0
    %375 = vmatpush.msra.mxu0 0.0
    %376 = vmatpush.msra.mxu0 %v84
    %377 = vmatmul.f32.gmra.mxu0 %v356
    %v378 = vpop.f32.mrf.mxu0
    %v379 = vadd.f32 %v350, %v378
    %380 = vmatmul.f32.gmra.mxu0 %v359
    %v381 = vpop.f32.mrf.mxu0
    %v382 = vadd.f32 %v353, %v381
    %383 = vdwg.mxu0
    %384 = vrot.lane.b32.xlu0 %v121, 112
    %v385 = vpop.permute.xlu0 %384
    %386 = vrot.lane.b32.xlu0 %v124, 112
    %v387 = vpop.permute.xlu0 %386
    %388 = vrot.lane.b32.xlu0 %v121, 80
    %v389 = vpop.permute.xlu0 %388
    %390 = vrot.lane.b32.xlu0 %v124, 80
    %v391 = vpop.permute.xlu0 %390
    %v392 = vsel %vm132, %v385, 0
    %v394 = vsel %vm132, %v387, 0
    %v396 = vsel %vm132, %v389, 0
    %v398 = vsel %vm132, %v391, 0
    %400 = vmatpush.xpose.msra.mxu0 0.0
    %401 = vmatpush.xpose.msra.mxu0 0.0
    %402 = vmatpush.xpose.msra.mxu0 0.0
    %403 = vmatpush.xpose.msra.mxu0 0.0
    %404 = vmatpush.xpose.msra.mxu0 0.0
    %405 = vmatpush.xpose.msra.mxu0 0.0
    %406 = vmatpush.xpose.msra.mxu0 0.0
    %407 = vmatpush.xpose.msra.mxu0 0.0
    %408 = vmatpush.xpose.msra.mxu0 0.0
    %409 = vmatpush.xpose.msra.mxu0 0.0
    %410 = vmatpush.xpose.msra.mxu0 0.0
    %411 = vmatpush.xpose.msra.mxu0 0.0
    %412 = vmatpush.xpose.msra.mxu0 0.0
    %413 = vmatpush.xpose.msra.mxu0 0.0
    %414 = vmatpush.xpose.msra.mxu0 %v398
    %415 = vmatpush.xpose.msra.mxu0 %v396
    %416 = vmatmul.f32.gmra.mxu0 %v392
    %v417 = vpop.f32.mrf.mxu0
    %v418 = vadd.f32 0.0, %v417
    %419 = vmatmul.f32.gmra.mxu0 %v394
    %v420 = vpop.f32.mrf.mxu0
    %v421 = vadd.f32 0.0, %v420
    %422 = vdwg.mxu0
    %v423 = vmul.f32 %v418, 0.35355338
    %v424 = vmul.f32 %v421, 0.35355338
    %v425 = vadd.f32 %v423, %v82
    %v426 = vadd.f32 %v424, %v83
    %v427 = vsel %vm168, %v425, -inf
    %428 = vmax.xlane.f32.xlu0 %v427
    %v429 = vpop.xlane.xlu0 %428
    %v430 = vsel %vm168, %v426, -inf
    %431 = vmax.xlane.f32.xlu0 %v430
    %v432 = vpop.xlane.xlu0 %431
    %v433 = vsub.f32 %v425, %v429
    %v434 = vsub.f32 %v426, %v432
    %v435 = vmul.f32 %v433, 1.442695
    %v436 = vpow.pop %v435
    %v437 = vmul.f32 %v434, 1.442695
    %v438 = vpow.pop %v437
    %v439 = vsel %vm168, %v436, 0.0
    %440 = vadd.xlane.f32.xlu0 %v439
    %v441 = vpop.xlane.xlu0 %440
    %v442 = vsel %vm168, %v438, 0.0
    %443 = vadd.xlane.f32.xlu0 %v442
    %v444 = vpop.xlane.xlu0 %443
    %v445 = vrcp.pop %v441
    %v446 = vrcp.pop %v444
    %v447 = vmul.f32 %v436, %v445
    %v448 = vmul.f32 %v438, %v446
    %449 = vrot.lane.b32.xlu0 %v121, 48
    %v450 = vpop.permute.xlu0 %449
    %451 = vrot.lane.b32.xlu0 %v124, 48
    %v452 = vpop.permute.xlu0 %451
    %v456 = vsel %vm168, %v447, 0
    %v459 = vsel %vm168, %v448, 0
    %461 = vmatpush.msra.mxu0 0.0
    %462 = vmatpush.msra.mxu0 0.0
    %463 = vmatpush.msra.mxu0 0.0
    %464 = vmatpush.msra.mxu0 0.0
    %465 = vmatpush.msra.mxu0 0.0
    %466 = vmatpush.msra.mxu0 0.0
    %467 = vmatpush.msra.mxu0 0.0
    %468 = vmatpush.msra.mxu0 0.0
    %469 = vmatpush.msra.mxu0 0.0
    %470 = vmatpush.msra.mxu0 0.0
    %471 = vmatpush.msra.mxu0 0.0
    %472 = vmatpush.msra.mxu0 0.0
    %473 = vmatpush.msra.mxu0 0.0
    %474 = vmatpush.msra.mxu0 0.0
    %475 = vmatpush.msra.mxu0 %v452
    %476 = vmatpush.msra.mxu0 %v450
    %477 = vmatmul.f32.gmra.mxu0 %v456
    %v478 = vpop.f32.mrf.mxu0
    %v479 = vadd.f32 0.0, %v478
    %480 = vmatmul.f32.gmra.mxu0 %v459
    %v481 = vpop.f32.mrf.mxu0
    %v482 = vadd.f32 0.0, %v481
    %483 = vdwg.mxu0
    %v485 = vsel %vm132, %v479, 0
    %v488 = vsel %vm132, %v482, 0
    %490 = vmatpush.msra.mxu0 0.0
    %491 = vmatpush.msra.mxu0 0.0
    %492 = vmatpush.msra.mxu0 0.0
    %493 = vmatpush.msra.mxu0 0.0
    %494 = vmatpush.msra.mxu0 0.0
    %495 = vmatpush.msra.mxu0 0.0
    %496 = vmatpush.msra.mxu0 0.0
    %497 = vmatpush.msra.mxu0 0.0
    %498 = vmatpush.msra.mxu0 0.0
    %499 = vmatpush.msra.mxu0 0.0
    %500 = vmatpush.msra.mxu0 0.0
    %501 = vmatpush.msra.mxu0 0.0
    %502 = vmatpush.msra.mxu0 0.0
    %503 = vmatpush.msra.mxu0 0.0
    %504 = vmatpush.msra.mxu0 0.0
    %505 = vmatpush.msra.mxu0 %v86
    %506 = vmatmul.f32.gmra.mxu0 %v485
    %v507 = vpop.f32.mrf.mxu0
    %v508 = vadd.f32 0.0, %v507
    %509 = vmatmul.f32.gmra.mxu0 %v488
    %v510 = vpop.f32.mrf.mxu0
    %v511 = vadd.f32 0.0, %v510
    %512 = vdwg.mxu0
    %v513 = vadd.f32 %v379, %v508
    %v514 = vadd.f32 %v382, %v511
    %515 = vrot.lane.b32.xlu0 %v121, 104
    %v516 = vpop.permute.xlu0 %515
    %517 = vrot.lane.b32.xlu0 %v124, 104
    %v518 = vpop.permute.xlu0 %517
    %519 = vrot.lane.b32.xlu0 %v121, 72
    %v520 = vpop.permute.xlu0 %519
    %521 = vrot.lane.b32.xlu0 %v124, 72
    %v522 = vpop.permute.xlu0 %521
    %v523 = vsel %vm132, %v516, 0
    %v525 = vsel %vm132, %v518, 0
    %v527 = vsel %vm132, %v520, 0
    %v529 = vsel %vm132, %v522, 0
    %531 = vmatpush.xpose.msra.mxu0 0.0
    %532 = vmatpush.xpose.msra.mxu0 0.0
    %533 = vmatpush.xpose.msra.mxu0 0.0
    %534 = vmatpush.xpose.msra.mxu0 0.0
    %535 = vmatpush.xpose.msra.mxu0 0.0
    %536 = vmatpush.xpose.msra.mxu0 0.0
    %537 = vmatpush.xpose.msra.mxu0 0.0
    %538 = vmatpush.xpose.msra.mxu0 0.0
    %539 = vmatpush.xpose.msra.mxu0 0.0
    %540 = vmatpush.xpose.msra.mxu0 0.0
    %541 = vmatpush.xpose.msra.mxu0 0.0
    %542 = vmatpush.xpose.msra.mxu0 0.0
    %543 = vmatpush.xpose.msra.mxu0 0.0
    %544 = vmatpush.xpose.msra.mxu0 0.0
    %545 = vmatpush.xpose.msra.mxu0 %v529
    %546 = vmatpush.xpose.msra.mxu0 %v527
    %547 = vmatmul.f32.gmra.mxu0 %v523
    %v548 = vpop.f32.mrf.mxu0
    %v549 = vadd.f32 0.0, %v548
    %550 = vmatmul.f32.gmra.mxu0 %v525
    %v551 = vpop.f32.mrf.mxu0
    %v552 = vadd.f32 0.0, %v551
    %553 = vdwg.mxu0
    %v554 = vmul.f32 %v549, 0.35355338
    %v555 = vmul.f32 %v552, 0.35355338
    %v556 = vadd.f32 %v554, %v82
    %v557 = vadd.f32 %v555, %v83
    %v558 = vsel %vm168, %v556, -inf
    %559 = vmax.xlane.f32.xlu0 %v558
    %v560 = vpop.xlane.xlu0 %559
    %v561 = vsel %vm168, %v557, -inf
    %562 = vmax.xlane.f32.xlu0 %v561
    %v563 = vpop.xlane.xlu0 %562
    %v564 = vsub.f32 %v556, %v560
    %v565 = vsub.f32 %v557, %v563
    %v566 = vmul.f32 %v564, 1.442695
    %v567 = vpow.pop %v566
    %v568 = vmul.f32 %v565, 1.442695
    %v569 = vpow.pop %v568
    %v570 = vsel %vm168, %v567, 0.0
    %571 = vadd.xlane.f32.xlu0 %v570
    %v572 = vpop.xlane.xlu0 %571
    %v573 = vsel %vm168, %v569, 0.0
    %574 = vadd.xlane.f32.xlu0 %v573
    %v575 = vpop.xlane.xlu0 %574
    %v576 = vrcp.pop %v572
    %v577 = vrcp.pop %v575
    %v578 = vmul.f32 %v567, %v576
    %v579 = vmul.f32 %v569, %v577
    %580 = vrot.lane.b32.xlu0 %v121, 40
    %v581 = vpop.permute.xlu0 %580
    %582 = vrot.lane.b32.xlu0 %v124, 40
    %v583 = vpop.permute.xlu0 %582
    %v587 = vsel %vm168, %v578, 0
    %v590 = vsel %vm168, %v579, 0
    %592 = vmatpush.msra.mxu0 0.0
    %593 = vmatpush.msra.mxu0 0.0
    %594 = vmatpush.msra.mxu0 0.0
    %595 = vmatpush.msra.mxu0 0.0
    %596 = vmatpush.msra.mxu0 0.0
    %597 = vmatpush.msra.mxu0 0.0
    %598 = vmatpush.msra.mxu0 0.0
    %599 = vmatpush.msra.mxu0 0.0
    %600 = vmatpush.msra.mxu0 0.0
    %601 = vmatpush.msra.mxu0 0.0
    %602 = vmatpush.msra.mxu0 0.0
    %603 = vmatpush.msra.mxu0 0.0
    %604 = vmatpush.msra.mxu0 0.0
    %605 = vmatpush.msra.mxu0 0.0
    %606 = vmatpush.msra.mxu0 %v583
    %607 = vmatpush.msra.mxu0 %v581
    %608 = vmatmul.f32.gmra.mxu0 %v587
    %v609 = vpop.f32.mrf.mxu0
    %v610 = vadd.f32 0.0, %v609
    %611 = vmatmul.f32.gmra.mxu0 %v590
    %v612 = vpop.f32.mrf.mxu0
    %v613 = vadd.f32 0.0, %v612
    %614 = vdwg.mxu0
    %v616 = vsel %vm132, %v610, 0
    %v619 = vsel %vm132, %v613, 0
    %621 = vmatpush.msra.mxu0 0.0
    %622 = vmatpush.msra.mxu0 0.0
    %623 = vmatpush.msra.mxu0 0.0
    %624 = vmatpush.msra.mxu0 0.0
    %625 = vmatpush.msra.mxu0 0.0
    %626 = vmatpush.msra.mxu0 0.0
    %627 = vmatpush.msra.mxu0 0.0
    %628 = vmatpush.msra.mxu0 0.0
    %629 = vmatpush.msra.mxu0 0.0
    %630 = vmatpush.msra.mxu0 0.0
    %631 = vmatpush.msra.mxu0 0.0
    %632 = vmatpush.msra.mxu0 0.0
    %633 = vmatpush.msra.mxu0 0.0
    %634 = vmatpush.msra.mxu0 0.0
    %635 = vmatpush.msra.mxu0 0.0
    %636 = vmatpush.msra.mxu0 %v87
    %637 = vmatmul.f32.gmra.mxu0 %v616
    %v638 = vpop.f32.mrf.mxu0
    %v639 = vadd.f32 0.0, %v638
    %640 = vmatmul.f32.gmra.mxu0 %v619
    %v641 = vpop.f32.mrf.mxu0
    %v642 = vadd.f32 0.0, %v641
    %643 = vdwg.mxu0
    %v644 = vadd.f32 %v513, %v639
    %v645 = vadd.f32 %v514, %v642
    %v646 = vld [vmem:[%s5] sm:$0x1]
    %v648 = vperm.slane %v646, 0
    %v650 = vadd.f32 %v644, %v648
    %v651 = vadd.f32 %v645, %v648
    %v652 = vadd.f32 %v650, %v80
    %v653 = vadd.f32 %v651, %v81
    %v654 = vld [vmem:[%s6] sm:$0x1]
    %v655 = vld [vmem:[%s7] sm:$0x1]
    %v656 = vsel %vm96, %v652, 0.0
    %657 = vadd.xlane.f32.xlu0 %v656
    %v658 = vpop.xlane.xlu0 %657
    %v659 = vsel %vm96, %v653, 0.0
    %660 = vadd.xlane.f32.xlu0 %v659
    %v661 = vpop.xlane.xlu0 %660
    %v662 = vrcp.pop 32.0
    %v663 = vmul.f32 32.0, %v662
    %v664 = vsub.f32 1.0, %v663
    %v665 = vmul.f32 %v662, %v664
    %v666 = vadd.f32 %v662, %v665
    %vm667 = vweird.f32 %v662
    %v668 = vsel %vm667, %v662, %v666
    %v669 = vmul.f32 %v658, %v668
    %v670 = vmul.f32 %v661, %v668
    %v671 = vsub.f32 %v652, %v669
    %v672 = vsub.f32 %v653, %v670
    %v673 = vmul.f32 %v671, %v671
    %v674 = vmul.f32 %v672, %v672
    %v675 = vsel %vm96, %v673, 0.0
    %676 = vadd.xlane.f32.xlu0 %v675
    %v677 = vpop.xlane.xlu0 %676
    %v678 = vsel %vm96, %v674, 0.0
    %679 = vadd.xlane.f32.xlu0 %v678
    %v680 = vpop.xlane.xlu0 %679
    %v681 = vmul.f32 %v677, %v668
    %v682 = vmul.f32 %v680, %v668
    %v683 = vadd.f32 %v681, 1e-12
    %v684 = vadd.f32 %v682, 1e-12
    %v685 = vrsqrt.pop %v683
    %v686 = vmul.f32 %v685, %v683
    %v687 = vmul.f32 %v686, %v685
    %v688 = vmul.f32 0.5, %v687
    %v689 = vsub.f32 1.5, %v688
    %v690 = vmul.f32 %v685, %v689
    %vm691 = vweird.f32 %v683
    %vm692 = vweird.f32 %v685
    %vm693 = vmor %vm691, %vm692
    %v694 = vsel %vm693, %v685, %v690
    %v695 = vrsqrt.pop %v684
    %v696 = vmul.f32 %v695, %v684
    %v697 = vmul.f32 %v696, %v695
    %v698 = vmul.f32 0.5, %v697
    %v699 = vsub.f32 1.5, %v698
    %v700 = vmul.f32 %v695, %v699
    %vm701 = vweird.f32 %v684
    %vm702 = vweird.f32 %v695
    %vm703 = vmor %vm701, %vm702
    %v704 = vsel %vm703, %v695, %v700
    %v705 = vmul.f32 %v671, %v694
    %v706 = vmul.f32 %v672, %v704
    %v708 = vperm.slane %v654, 0
    %v710 = vmul.f32 %v705, %v708
    %v711 = vmul.f32 %v706, %v708
    %v713 = vperm.slane %v655, 0
    %v715 = vadd.f32 %v710, %v713
    %v716 = vadd.f32 %v711, %v713
    %v717 = vld [vmem:[%s8] sm:$0xff]
    %v718 = vld [vmem:[%s8 + $0x8] sm:$0xff]
    %v719 = vld [vmem:[%s8 + $0x10] sm:$0xff]
    %v720 = vld [vmem:[%s8 + $0x18] sm:$0xff]
    %v721 = vld [vmem:[%s9] sm:$0x1]
    %v723 = vperm.slane %v721, 0
    %v726 = vsel %vm96, %v715, 0
    %v729 = vsel %vm96, %v716, 0
    %731 = vmatpush.msra.mxu0 0.0
    %732 = vmatpush.msra.mxu0 0.0
    %733 = vmatpush.msra.mxu0 0.0
    %734 = vmatpush.msra.mxu0 0.0
    %735 = vmatpush.msra.mxu0 0.0
    %736 = vmatpush.msra.mxu0 0.0
    %737 = vmatpush.msra.mxu0 0.0
    %738 = vmatpush.msra.mxu0 0.0
    %739 = vmatpush.msra.mxu0 0.0
    %740 = vmatpush.msra.mxu0 0.0
    %741 = vmatpush.msra.mxu0 0.0
    %742 = vmatpush.msra.mxu0 0.0
    %743 = vmatpush.msra.mxu0 %v720
    %744 = vmatpush.msra.mxu0 %v719
    %745 = vmatpush.msra.mxu0 %v718
    %746 = vmatpush.msra.mxu0 %v717
    %747 = vmatmul.f32.gmra.mxu0 %v726
    %v748 = vpop.f32.mrf.mxu0
    %v749 = vadd.f32 %v723, %v748
    %750 = vmatmul.f32.gmra.mxu0 %v729
    %v751 = vpop.f32.mrf.mxu0
    %v752 = vadd.f32 %v723, %v751
    %753 = vdwg.mxu0
    %v754 = vmul.f32 %v749, 0.5
    %v755 = vmul.f32 %v752, 0.5
    %v756 = vmul.f32 %v749, 0.70710677
    %v757 = vmul.f32 %v752, 0.70710677
    %v758 = vmul.f32 %v756, %v756
    %v759 = vmin.f32 16.0, %v758
    %v760 = vmul.f32 %v759, 2.1237322e-06
    %v761 = vadd.f32 %v760, 0.00028619796
    %v762 = vmul.f32 %v759, %v761
    %v763 = vadd.f32 %v762, 0.0036580483
    %v764 = vmul.f32 %v759, %v763
    %v765 = vadd.f32 %v764, 0.05243302
    %v766 = vmul.f32 %v759, %v765
    %v767 = vadd.f32 %v766, 0.18741608
    %v768 = vmul.f32 %v759, %v767
    %v769 = vadd.f32 %v768, 1.1283791
    %v770 = vmul.f32 %v756, %v769
    %v771 = vmul.f32 %v759, 3.8918573e-05
    %v772 = vadd.f32 %v771, 0.001143296
    %v773 = vmul.f32 %v759, %v772
    %v774 = vadd.f32 %v773, 0.014752088
    %v775 = vmul.f32 %v759, %v774
    %v776 = vadd.f32 %v775, 0.112945676
    %v777 = vmul.f32 %v759, %v776
    %v778 = vadd.f32 %v777, 0.4994258
    %v779 = vmul.f32 %v759, %v778
    %v780 = vadd.f32 %v779, 1.0
    %v781 = vrcp.pop %v780
    %v782 = vmul.f32 %v780, %v781
    %v783 = vsub.f32 1.0, %v782
    %v784 = vmul.f32 %v781, %v783
    %v785 = vadd.f32 %v781, %v784
    %vm786 = vweird.f32 %v780
    %vm787 = vweird.f32 %v781
    %vm788 = vmor %vm786, %vm787
    %v789 = vsel %vm788, %v781, %v785
    %v790 = vand.u32 2147483647, %v780
    %vm791 = vcmp.eq.f32.partialorder %v790, 8.507059e+37
    %v792 = vand.u32 %v780, 2147483648
    %v793 = vor.u32 1.1754944e-38, %v792
    %v794 = vsel %vm791, %v793, %v789
    %v795 = vmul.f32 %v770, %v794
    %v796 = vmin.f32 %v795, 1.0
    %v797 = vmax.f32 %v796, -1.0
    %v798 = vmul.f32 %v757, %v757
    %v799 = vmin.f32 16.0, %v798
    %v800 = vmul.f32 %v799, 2.1237322e-06
    %v801 = vadd.f32 %v800, 0.00028619796
    %v802 = vmul.f32 %v799, %v801
    %v803 = vadd.f32 %v802, 0.0036580483
    %v804 = vmul.f32 %v799, %v803
    %v805 = vadd.f32 %v804, 0.05243302
    %v806 = vmul.f32 %v799, %v805
    %v807 = vadd.f32 %v806, 0.18741608
    %v808 = vmul.f32 %v799, %v807
    %v809 = vadd.f32 %v808, 1.1283791
    %v810 = vmul.f32 %v757, %v809
    %v811 = vmul.f32 %v799, 3.8918573e-05
    %v812 = vadd.f32 %v811, 0.001143296
    %v813 = vmul.f32 %v799, %v812
    %v814 = vadd.f32 %v813, 0.014752088
    %v815 = vmul.f32 %v799, %v814
    %v816 = vadd.f32 %v815, 0.112945676
    %v817 = vmul.f32 %v799, %v816
    %v818 = vadd.f32 %v817, 0.4994258
    %v819 = vmul.f32 %v799, %v818
    %v820 = vadd.f32 %v819, 1.0
    %v821 = vrcp.pop %v820
    %v822 = vmul.f32 %v820, %v821
    %v823 = vsub.f32 1.0, %v822
    %v824 = vmul.f32 %v821, %v823
    %v825 = vadd.f32 %v821, %v824
    %vm826 = vweird.f32 %v820
    %vm827 = vweird.f32 %v821
    %vm828 = vmor %vm826, %vm827
    %v829 = vsel %vm828, %v821, %v825
    %v830 = vand.u32 2147483647, %v820
    %vm831 = vcmp.eq.f32.partialorder %v830, 8.507059e+37
    %v832 = vand.u32 %v820, 2147483648
    %v833 = vor.u32 1.1754944e-38, %v832
    %v834 = vsel %vm831, %v833, %v829
    %v835 = vmul.f32 %v810, %v834
    %v836 = vmin.f32 %v835, 1.0
    %v837 = vmax.f32 %v836, -1.0
    %v838 = vadd.f32 %v797, 1.0
    %v839 = vadd.f32 %v837, 1.0
    %v840 = vmul.f32 %v754, %v838
    %v841 = vmul.f32 %v755, %v839
    %v842 = vld [vmem:[%s10] sm:$0xff]
    %v843 = vld [vmem:[%s10 + $0x8] sm:$0xff]
    %v844 = vld [vmem:[%s10 + $0x10] sm:$0xff]
    %v845 = vld [vmem:[%s10 + $0x18] sm:$0xff]
    %v846 = vld [vmem:[%s10 + $0x20] sm:$0xff]
    %v847 = vld [vmem:[%s10 + $0x28] sm:$0xff]
    %v848 = vld [vmem:[%s10 + $0x30] sm:$0xff]
    %v849 = vld [vmem:[%s10 + $0x38] sm:$0xff]
    %v850 = vld [vmem:[%s11] sm:$0x1]
    %v852 = vperm.slane %v850, 0
    %vm854 = vcmask 523264
    %v856 = vsel %vm854, %v840, 0
    %v859 = vsel %vm854, %v841, 0
    %861 = vmatpush.msra.mxu0 0.0
    %862 = vmatpush.msra.mxu0 0.0
    %863 = vmatpush.msra.mxu0 0.0
    %864 = vmatpush.msra.mxu0 0.0
    %865 = vmatpush.msra.mxu0 0.0
    %866 = vmatpush.msra.mxu0 0.0
    %867 = vmatpush.msra.mxu0 0.0
    %868 = vmatpush.msra.mxu0 0.0
    %869 = vmatpush.msra.mxu0 %v849
    %870 = vmatpush.msra.mxu0 %v848
    %871 = vmatpush.msra.mxu0 %v847
    %872 = vmatpush.msra.mxu0 %v846
    %873 = vmatpush.msra.mxu0 %v845
    %874 = vmatpush.msra.mxu0 %v844
    %875 = vmatpush.msra.mxu0 %v843
    %876 = vmatpush.msra.mxu0 %v842
    %877 = vmatmul.f32.gmra.mxu0 %v856
    %v878 = vpop.f32.mrf.mxu0
    %v879 = vadd.f32 %v852, %v878
    %880 = vmatmul.f32.gmra.mxu0 %v859
    %v881 = vpop.f32.mrf.mxu0
    %v882 = vadd.f32 %v852, %v881
    %883 = vdwg.mxu0
    %v884 = vadd.f32 %v879, %v715
    %v885 = vadd.f32 %v882, %v716
    %v886 = vld [vmem:[%s12] sm:$0x1]
    %v887 = vld [vmem:[%s13] sm:$0x1]
    %v888 = vsel %vm96, %v884, 0.0
    %889 = vadd.xlane.f32.xlu0 %v888
    %v890 = vpop.xlane.xlu0 %889
    %v891 = vsel %vm96, %v885, 0.0
    %892 = vadd.xlane.f32.xlu0 %v891
    %v893 = vpop.xlane.xlu0 %892
    %v894 = vmul.f32 %v890, %v668
    %v895 = vmul.f32 %v893, %v668
    %v896 = vsub.f32 %v884, %v894
    %v897 = vsub.f32 %v885, %v895
    %v898 = vmul.f32 %v896, %v896
    %v899 = vmul.f32 %v897, %v897
    %v900 = vsel %vm96, %v898, 0.0
    %901 = vadd.xlane.f32.xlu0 %v900
    %v902 = vpop.xlane.xlu0 %901
    %v903 = vsel %vm96, %v899, 0.0
    %904 = vadd.xlane.f32.xlu0 %v903
    %v905 = vpop.xlane.xlu0 %904
    %v906 = vmul.f32 %v902, %v668
    %v907 = vmul.f32 %v905, %v668
    %v908 = vadd.f32 %v906, 1e-12
    %v909 = vadd.f32 %v907, 1e-12
    %v910 = vrsqrt.pop %v908
    %v911 = vmul.f32 %v910, %v908
    %v912 = vmul.f32 %v911, %v910
    %v913 = vmul.f32 0.5, %v912
    %v914 = vsub.f32 1.5, %v913
    %v915 = vmul.f32 %v910, %v914
    %vm916 = vweird.f32 %v908
    %vm917 = vweird.f32 %v910
    %vm918 = vmor %vm916, %vm917
    %v919 = vsel %vm918, %v910, %v915
    %v920 = vrsqrt.pop %v909
    %v921 = vmul.f32 %v920, %v909
    %v922 = vmul.f32 %v921, %v920
    %v923 = vmul.f32 0.5, %v922
    %v924 = vsub.f32 1.5, %v923
    %v925 = vmul.f32 %v920, %v924
    %vm926 = vweird.f32 %v909
    %vm927 = vweird.f32 %v920
    %vm928 = vmor %vm926, %vm927
    %v929 = vsel %vm928, %v920, %v925
    %v930 = vmul.f32 %v896, %v919
    %v931 = vmul.f32 %v897, %v929
    %v933 = vperm.slane %v886, 0
    %v935 = vmul.f32 %v930, %v933
    %v936 = vmul.f32 %v931, %v933
    %v938 = vperm.slane %v887, 0
    %v940 = vadd.f32 %v935, %v938
    %v941 = vadd.f32 %v936, %v938
    %942 = vst.msk [vmem:[#allocation7] sm:$0xff] %vm96, %v940
    %943 = vst.msk [vmem:[#allocation7 + $0x8] sm:$0xff] %vm96, %v941
    // Predicated region
    $region66: #{tpu_custom_call.1} parent=1 // pred_check
      _
    $region67: #{tpu_custom_call.1} parent=1 // pred_check_branch
      %945 = sbr.rel (0) target = $region69
    $region68: #{tpu_custom_call.1} parent=1 // pred_region
      %947 = vsyncadd [#allocation4], 0
      %s948 = sshll.u32 [#allocation7], 4
      %s949 = int_to_ptr.vmem [resolvable:$true] %s948
      %s950 = sshll.u32 %s14, 4
      %s951 = int_to_ptr.hbm [resolvable:$true] %s950
      %956 = dma.vmem_to_hbm [thread:$0]  %s949, 256, %s951, [#allocation4], 128, 128, 8
    $region69: #{tpu_custom_call.1} parent=1 // pred_fallthru
      _
    // Predicated region
    $region70: #{tpu_custom_call.1} parent=1 // pred_check
      _
    $region71: #{tpu_custom_call.1} parent=1 // pred_check_branch
      %958 = sbr.rel (0) target = $region73
    $region72: #{tpu_custom_call.1} parent=1 // pred_region
      %960 = dma.done [#allocation4], 256
    $region73: #{tpu_custom_call.1} parent=1 // pred_fallthru
      _
    %961 = vsyncpa [#allocation3], 1
    %962 = vsyncpa [#allocation6], 1
    %963 = vsyncpa [#allocation4], 1

</llo_original>
